<compile_context>
chip_gen: v7x
topology: tpu7x:2x2x1
jax: 0.10.0
libtpu: 0.0.40
codegen_flags: <defaults>
</compile_context>

<pallas_src>
import jax
import jax.numpy as jnp
from jax import lax
from jax.experimental import pallas as pl
from jax.experimental.pallas import tpu as pltpu

LANE = 128
SUBLANE = 8


def _round_up(x, m):
    return (x + m - 1) // m * m


# ---------------------------------------------------------------------------
# Fused T-step decoder kernel.  One grid step == one module forward() step.
# ---------------------------------------------------------------------------
def fused_decoder_kernel(tok_ref,      # SMEM (T, BP) int32   (scalar prefetch)
                         wg_ref,       # VMEM (HP+VP, 4*HP) bf16  (resident)
                         bg_ref,       # VMEM (1, 4*HP) f32       (resident)
                         wout_ref,     # VMEM (HP, VP) bf16       (resident)
                         bout_ref,     # VMEM (1, VP) f32         (resident)
                         h0_ref,       # VMEM (BP, HP) f32        (resident)
                         logp_ref,     # VMEM out (BP, VP) f32    (per-step block)
                         hout_ref):    # VMEM out (BP, HP) f32    (resident = hidden carry)
    t = pl.program_id(0)
    BP, HP = hout_ref.shape
    VP = wout_ref.shape[1]

    @pl.when(t == 0)
    def _():
        hout_ref[...] = h0_ref[...]          # initialize the in-VMEM hidden carry

    h = hout_ref[...]                        # (BP, HP) f32; padded lanes are 0

    # one-hot(token) built from SMEM scalars (no lane-sparse VMEM token block).
    sub = lax.broadcasted_iota(jnp.int32, (BP, VP), 0)
    lane = lax.broadcasted_iota(jnp.int32, (BP, VP), 1)
    tok_b = jnp.zeros((BP, VP), jnp.int32)
    for b in range(BP):                      # BP = 8, static unroll, full-vreg VPU ops
        tok_b = jnp.where(sub == b, tok_ref[t, b], tok_b)
    onehot = jnp.where(lane == tok_b, 1.0, 0.0).astype(jnp.bfloat16)   # exact in bf16

    # Single MXU dot for all GRU gates: K = HP + VP = 256, concat seam at lane 128
    # (vreg boundary).  Column groups (128 lanes each): [r | z | i_n | h_n].
    xh = jnp.concatenate([h.astype(jnp.bfloat16), onehot], axis=-1)    # (BP, 256) bf16
    gates = jnp.dot(xh, wg_ref[...],
                    preferred_element_type=jnp.float32) + bg_ref[...]  # f32 accum + f32 bias

    r = jax.nn.sigmoid(gates[:, 0 * HP:1 * HP])
    z = jax.nn.sigmoid(gates[:, 1 * HP:2 * HP])
    n = jnp.tanh(gates[:, 2 * HP:3 * HP] + r * gates[:, 3 * HP:4 * HP])
    h_new = (1.0 - z) * n + z * h            # padded lanes stay exactly 0
    hout_ref[...] = h_new                    # carry for the next step (flushed once at end)

    # Linear(H -> V) on the 128-lane padded vocab + LogSoftmax(dim=1) in f32.
    # Pad columns carry a -1e30 f32 bias so they drop out of max / sum.
    logits = jnp.dot(h_new.astype(jnp.bfloat16), wout_ref[...],
                     preferred_element_type=jnp.float32) + bout_ref[...]
    m = jnp.max(logits, axis=-1, keepdims=True)
    s = logits - m
    lse = jnp.log(jnp.sum(jnp.exp(s), axis=-1, keepdims=True))
    logp_ref[...] = (s - lse).astype(logp_ref.dtype)


# ---------------------------------------------------------------------------
# One-time parameter repacking (hoisted out of the hot path).
# ---------------------------------------------------------------------------
def pack_params(params):
    emb = params["embedding"].astype(jnp.float32)     # (V, E)
    wih = params["wih"].astype(jnp.float32)           # (3, E, H)  gates [r, z, n]
    whh = params["whh"].astype(jnp.float32)           # (3, H, H)
    bih = params["bih"].astype(jnp.float32)           # (3, 1, H)
    bhh = params["bhh"].astype(jnp.float32)           # (3, 1, H)
    wout = params["wout"].astype(jnp.float32)         # (H, V)
    bout = params["bout"].astype(jnp.float32)         # (1, V)

    V, E = emb.shape
    H = whh.shape[-1]
    HP = _round_up(H, LANE)        # padded hidden / gate-group width (128)
    VP = _round_up(V, LANE)        # padded vocab / one-hot width (128)

    # relu commutes with the exact one-hot row gather, so fold
    # relu(embedding) @ W_ih into per-token gate tables (in f32, then quantize).
    gx = jnp.einsum("ve,geh->gvh", jnp.maximum(emb, 0.0), wih)    # (3, V, H)

    # Fused gate matrix: rows [0:HP) multiply the (padded) hidden state,
    # rows [HP:HP+VP) multiply the (padded) one-hot token.
    K = HP + VP
    w_big = jnp.zeros((K, 4 * HP), jnp.float32)
    w_big = w_big.at[:H, 0 * HP:0 * HP + H].set(whh[0])           # r  (h side)
    w_big = w_big.at[:H, 1 * HP:1 * HP + H].set(whh[1])           # z  (h side)
    w_big = w_big.at[:H, 3 * HP:3 * HP + H].set(whh[2])           # h_n (h side)
    w_big = w_big.at[HP:HP + V, 0 * HP:0 * HP + H].set(gx[0])     # r  (x side)
    w_big = w_big.at[HP:HP + V, 1 * HP:1 * HP + H].set(gx[1])     # z  (x side)
    w_big = w_big.at[HP:HP + V, 2 * HP:2 * HP + H].set(gx[2])     # i_n (x side)

    b_big = jnp.zeros((1, 4 * HP), jnp.float32)
    b_big = b_big.at[:, 0 * HP:0 * HP + H].set(bih[0] + bhh[0])
    b_big = b_big.at[:, 1 * HP:1 * HP + H].set(bih[1] + bhh[1])
    b_big = b_big.at[:, 2 * HP:2 * HP + H].set(bih[2])
    b_big = b_big.at[:, 3 * HP:3 * HP + H].set(bhh[2])

    wout_p = jnp.zeros((HP, VP), jnp.float32).at[:H, :V].set(wout)
    bout_p = jnp.full((1, VP), -1e30, jnp.float32).at[:, :V].set(bout)   # kept f32

    return {"w_big": w_big.astype(jnp.bfloat16),    # bf16 MXU weights
            "b_big": b_big,                          # f32 biases
            "wout": wout_p.astype(jnp.bfloat16),
            "bout": bout_p,
            "vocab_size": V, "hidden_dim": H}


# ---------------------------------------------------------------------------
# Hot-path wrapper: pad once, ONE pallas_call for all T steps, slice once.
# ---------------------------------------------------------------------------
def decode_sequence(tokens_seq, hidden0, packed):
    """tokens_seq: (T, B) int32, hidden0: (1, B, H) f32
       -> (log-probs (T, B, V), final hidden (1, B, H))."""
    w_big, b_big = packed["w_big"], packed["b_big"]
    wout_p, bout_p = packed["wout"], packed["bout"]
    V, H = packed["vocab_size"], packed["hidden_dim"]
    HP, VP = wout_p.shape
    K = w_big.shape[0]

    T, B = tokens_seq.shape
    BP = _round_up(B, SUBLANE)

    # Pad once outside the fused kernel (amortized over T steps).
    tok = jnp.pad(tokens_seq.astype(jnp.int32), ((0, 0), (0, BP - B)))      # (T, BP)
    h0 = jnp.pad(hidden0[0].astype(jnp.float32),
                 ((0, BP - B), (0, HP - H)))                                # (BP, HP)

    grid_spec = pltpu.PrefetchScalarGridSpec(
        num_scalar_prefetch=1,          # tokens -> SMEM
        grid=(T,),
        in_specs=[
            pl.BlockSpec((K, 4 * HP), lambda t, _tok: (0, 0)),   # w_big   (resident)
            pl.BlockSpec((1, 4 * HP), lambda t, _tok: (0, 0)),   # b_big   (resident)
            pl.BlockSpec((HP, VP), lambda t, _tok: (0, 0)),      # wout    (resident)
            pl.BlockSpec((1, VP), lambda t, _tok: (0, 0)),       # bout    (resident)
            pl.BlockSpec((BP, HP), lambda t, _tok: (0, 0)),      # h0      (resident)
        ],
        out_specs=(
            pl.BlockSpec((None, BP, VP), lambda t, _tok: (t, 0, 0)),  # per-step log-probs
            pl.BlockSpec((BP, HP), lambda t, _tok: (0, 0)),           # final hidden carry
        ),
    )

    logp_p, h_p = pl.pallas_call(
        fused_decoder_kernel,
        out_shape=(
            jax.ShapeDtypeStruct((T, BP, VP), jnp.float32),
            jax.ShapeDtypeStruct((BP, HP), jnp.float32),
        ),
        grid_spec=grid_spec,
        compiler_params=pltpu.CompilerParams(
            dimension_semantics=("arbitrary",)),   # recurrent axis
    )(tok, w_big, b_big, wout_p, bout_p, h0)

    return logp_p[:, :B, :V], h_p[:B, :H][None]


def single_instruction_decoder(tokens, hidden, packed):
    """Original module forward: tokens (B, 1) int32, hidden (1, B, H)
       -> (log-probs (B, V), hidden (1, B, H)).  (T = 1 fused kernel.)"""
    logp, h_new = decode_sequence(tokens.reshape(1, -1), hidden, packed)
    return logp[0], h_new


# ---------------------------------------------------------------------------
# Pure-JAX f32 reference (mirrors the PyTorch forward exactly), one step.
# ---------------------------------------------------------------------------
def reference_step(tokens, h, params):
    """tokens: (B,) int32, h: (B, H) -> (logp (B, V), h_new (B, H))."""
    x = jnp.maximum(jnp.take(params["embedding"], tokens, axis=0), 0.0)  # relu(embed)
    wih, whh, bih, bhh = params["wih"], params["whh"], params["bih"], params["bhh"]
    i_r = x @ wih[0] + bih[0]; i_z = x @ wih[1] + bih[1]; i_n = x @ wih[2] + bih[2]
    h_r = h @ whh[0] + bhh[0]; h_z = h @ whh[1] + bhh[1]; h_n = h @ whh[2] + bhh[2]
    r = jax.nn.sigmoid(i_r + h_r)
    z = jax.nn.sigmoid(i_z + h_z)
    n = jnp.tanh(i_n + r * h_n)
    h_new = (1.0 - z) * n + z * h
    logits = h_new @ params["wout"] + params["bout"]
    return jax.nn.log_softmax(logits, axis=1), h_new


# ---------------------------------------------------------------------------
# Deterministic parameter init + run
# ---------------------------------------------------------------------------
def init_params(key, vocab_size, embedding_dim, hidden_dim):
    ks = jax.random.split(key, 7)
    scale = 0.1
    return {
        "embedding": scale * jax.random.normal(ks[0], (vocab_size, embedding_dim), jnp.float32),
        "wih":  scale * jax.random.normal(ks[1], (3, embedding_dim, hidden_dim), jnp.float32),
        "whh":  scale * jax.random.normal(ks[2], (3, hidden_dim, hidden_dim), jnp.float32),
        "bih":  scale * jax.random.normal(ks[3], (3, 1, hidden_dim), jnp.float32),
        "bhh":  scale * jax.random.normal(ks[4], (3, 1, hidden_dim), jnp.float32),
        "wout": scale * jax.random.normal(ks[5], (hidden_dim, vocab_size), jnp.float32),
        "bout": scale * jax.random.normal(ks[6], (1, vocab_size), jnp.float32),
    }


if __name__ == "__main__":
    batch_size = 4
    embedding_dim = 32
    hidden_dim = 32
    vocab_size = 64
    seq_len = 8

    key = jax.random.PRNGKey(0)
    kp, kt = jax.random.split(key)
    params = init_params(kp, vocab_size, embedding_dim, hidden_dim)
    packed = pack_params(params)                          # one-time repacking (bf16)

    tokens_seq = jax.random.randint(kt, (seq_len, batch_size), 0, vocab_size,
                                    dtype=jnp.int32)
    hidden0 = jnp.zeros((1, batch_size, hidden_dim), jnp.float32)   # initHidden

    # Fused T-step decode (teacher-forced tokens), single pallas_call.
    logp_all, h_final = decode_sequence(tokens_seq, hidden0, packed)
    logp_all = jax.block_until_ready(logp_all)
    h_final = jax.block_until_ready(h_final)
    assert logp_all.shape == (seq_len, batch_size, vocab_size)
    assert h_final.shape == (1, batch_size, hidden_dim)

    # Step-by-step f32 reference (tolerance loosened for bf16 MXU operands).
    h_ref = hidden0[0]
    for t in range(seq_len):
        logp_ref, h_ref = reference_step(tokens_seq[t], h_ref, params)
        assert jnp.allclose(logp_all[t], logp_ref, atol=2e-2, rtol=2e-2), \
            (t, float(jnp.max(jnp.abs(logp_all[t] - logp_ref))))
    assert jnp.allclose(h_final[0], h_ref, atol=2e-2, rtol=2e-2), \
        float(jnp.max(jnp.abs(h_final[0] - h_ref)))

    # Single-step path (matches the original module forward signature).
    logp1, h1 = single_instruction_decoder(tokens_seq[0][:, None], hidden0, packed)
    logp1 = jax.block_until_ready(logp1)
    h1 = jax.block_until_ready(h1)
    logp1_ref, h1_ref = reference_step(tokens_seq[0], hidden0[0], params)
    assert logp1.shape == (batch_size, vocab_size)
    assert h1.shape == (1, batch_size, hidden_dim)
    assert jnp.allclose(logp1, logp1_ref, atol=2e-2, rtol=2e-2), \
        float(jnp.max(jnp.abs(logp1 - logp1_ref)))
    assert jnp.allclose(h1[0], h1_ref, atol=2e-2, rtol=2e-2)

    print("KERNEL_OK")
</pallas_src>

<mosaic_0001>
module attributes {stable_mosaic.version = 11 : i64} {
  func.func @fused_decoder_kernel(%arg0: i32, %arg1: memref<8x8xi32, #tpu.memory_space<smem>>, %arg2: memref<256x512xbf16, #tpu.memory_space<vmem>>, %arg3: memref<1x512xf32, #tpu.memory_space<vmem>>, %arg4: memref<128x128xbf16, #tpu.memory_space<vmem>>, %arg5: memref<1x128xf32, #tpu.memory_space<vmem>>, %arg6: memref<8x128xf32, #tpu.memory_space<vmem>>, %arg7: memref<1x8x128xf32, #tpu.memory_space<vmem>>, %arg8: memref<8x128xf32, #tpu.memory_space<vmem>>) attributes {dimension_semantics = [#tpu.dimension_semantics<arbitrary>], iteration_bounds = array<i64: 8>, scalar_prefetch = 1 : i64, scratch_operands = 0 : i64, tpu.core_type = #tpu.core_type<tc>, window_params = [{pipeline_mode = #tpu.pipeline_mode<synchronous>, transform_indices = @transform_0, window_bounds = array<i64: 256, 512>}, {pipeline_mode = #tpu.pipeline_mode<synchronous>, transform_indices = @transform_1, window_bounds = array<i64: 1, 512>}, {pipeline_mode = #tpu.pipeline_mode<synchronous>, transform_indices = @transform_2, window_bounds = array<i64: 128, 128>}, {pipeline_mode = #tpu.pipeline_mode<synchronous>, transform_indices = @transform_3, window_bounds = array<i64: 1, 128>}, {pipeline_mode = #tpu.pipeline_mode<synchronous>, transform_indices = @transform_4, window_bounds = array<i64: 8, 128>}, {transform_indices = @transform_5, window_bounds = array<i64: 1, 8, 128>}, {pipeline_mode = #tpu.pipeline_mode<synchronous>, transform_indices = @transform_6, window_bounds = array<i64: 8, 128>}]} {
    %c0_i32 = arith.constant 0 : i32
    %0 = arith.cmpi eq, %arg0, %c0_i32 : i32
    %1 = arith.extui %0 : i1 to i32
    %c0_i32_0 = arith.constant 0 : i32
    %2 = arith.cmpi ne, %1, %c0_i32_0 : i32
    scf.if %2 {
      %c0_26 = arith.constant 0 : index
      %c0_27 = arith.constant 0 : index
      %109 = vector.load %arg6[%c0_26, %c0_27] : memref<8x128xf32, #tpu.memory_space<vmem>>, vector<8x128xf32>
      %c0_28 = arith.constant 0 : index
      %c0_29 = arith.constant 0 : index
      %110 = vector.load %arg8[%c0_28, %c0_29] : memref<8x128xf32, #tpu.memory_space<vmem>>, vector<8x128xf32>
      tpu.vector_store %arg8[%c0_28, %c0_29], %109 {strides = array<i32>} : memref<8x128xf32, #tpu.memory_space<vmem>>, vector<8x128xf32>,
    } else {
    }
    %c0 = arith.constant 0 : index
    %c0_1 = arith.constant 0 : index
    %3 = vector.load %arg8[%c0, %c0_1] : memref<8x128xf32, #tpu.memory_space<vmem>>, vector<8x128xf32>
    %4 = tpu.iota {dimensions = array<i32: 0>} : vector<8x128xi32>
    %5 = tpu.iota {dimensions = array<i32: 1>} : vector<8x128xi32>
    %c0_i32_2 = arith.constant 0 : i32
    %6 = vector.broadcast %c0_i32_2 : i32 to vector<8x128xi32>
    %c0_i32_3 = arith.constant 0 : i32
    %7 = vector.broadcast %c0_i32_3 : i32 to vector<8x128xi32>
    %8 = arith.cmpi eq, %4, %7 : vector<8x128xi32>
    %9 = arith.index_cast %arg0 : i32 to index
    %c0_4 = arith.constant 0 : index
    %10 = memref.load %arg1[%9, %c0_4] : memref<8x8xi32, #tpu.memory_space<smem>>
    %11 = vector.broadcast %10 : i32 to vector<8x128xi32>
    %12 = arith.select %8, %11, %6 : vector<8x128xi1>, vector<8x128xi32>
    %c1_i32 = arith.constant 1 : i32
    %13 = vector.broadcast %c1_i32 : i32 to vector<8x128xi32>
    %14 = arith.cmpi eq, %4, %13 : vector<8x128xi32>
    %15 = arith.index_cast %arg0 : i32 to index
    %c1 = arith.constant 1 : index
    %16 = memref.load %arg1[%15, %c1] : memref<8x8xi32, #tpu.memory_space<smem>>
    %17 = vector.broadcast %16 : i32 to vector<8x128xi32>
    %18 = arith.select %14, %17, %12 : vector<8x128xi1>, vector<8x128xi32>
    %c2_i32 = arith.constant 2 : i32
    %19 = vector.broadcast %c2_i32 : i32 to vector<8x128xi32>
    %20 = arith.cmpi eq, %4, %19 : vector<8x128xi32>
    %21 = arith.index_cast %arg0 : i32 to index
    %c2 = arith.constant 2 : index
    %22 = memref.load %arg1[%21, %c2] : memref<8x8xi32, #tpu.memory_space<smem>>
    %23 = vector.broadcast %22 : i32 to vector<8x128xi32>
    %24 = arith.select %20, %23, %18 : vector<8x128xi1>, vector<8x128xi32>
    %c3_i32 = arith.constant 3 : i32
    %25 = vector.broadcast %c3_i32 : i32 to vector<8x128xi32>
    %26 = arith.cmpi eq, %4, %25 : vector<8x128xi32>
    %27 = arith.index_cast %arg0 : i32 to index
    %c3 = arith.constant 3 : index
    %28 = memref.load %arg1[%27, %c3] : memref<8x8xi32, #tpu.memory_space<smem>>
    %29 = vector.broadcast %28 : i32 to vector<8x128xi32>
    %30 = arith.select %26, %29, %24 : vector<8x128xi1>, vector<8x128xi32>
    %c4_i32 = arith.constant 4 : i32
    %31 = vector.broadcast %c4_i32 : i32 to vector<8x128xi32>
    %32 = arith.cmpi eq, %4, %31 : vector<8x128xi32>
    %33 = arith.index_cast %arg0 : i32 to index
    %c4 = arith.constant 4 : index
    %34 = memref.load %arg1[%33, %c4] : memref<8x8xi32, #tpu.memory_space<smem>>
    %35 = vector.broadcast %34 : i32 to vector<8x128xi32>
    %36 = arith.select %32, %35, %30 : vector<8x128xi1>, vector<8x128xi32>
    %c5_i32 = arith.constant 5 : i32
    %37 = vector.broadcast %c5_i32 : i32 to vector<8x128xi32>
    %38 = arith.cmpi eq, %4, %37 : vector<8x128xi32>
    %39 = arith.index_cast %arg0 : i32 to index
    %c5 = arith.constant 5 : index
    %40 = memref.load %arg1[%39, %c5] : memref<8x8xi32, #tpu.memory_space<smem>>
    %41 = vector.broadcast %40 : i32 to vector<8x128xi32>
    %42 = arith.select %38, %41, %36 : vector<8x128xi1>, vector<8x128xi32>
    %c6_i32 = arith.constant 6 : i32
    %43 = vector.broadcast %c6_i32 : i32 to vector<8x128xi32>
    %44 = arith.cmpi eq, %4, %43 : vector<8x128xi32>
    %45 = arith.index_cast %arg0 : i32 to index
    %c6 = arith.constant 6 : index
    %46 = memref.load %arg1[%45, %c6] : memref<8x8xi32, #tpu.memory_space<smem>>
    %47 = vector.broadcast %46 : i32 to vector<8x128xi32>
    %48 = arith.select %44, %47, %42 : vector<8x128xi1>, vector<8x128xi32>
    %c7_i32 = arith.constant 7 : i32
    %49 = vector.broadcast %c7_i32 : i32 to vector<8x128xi32>
    %50 = arith.cmpi eq, %4, %49 : vector<8x128xi32>
    %51 = arith.index_cast %arg0 : i32 to index
    %c7 = arith.constant 7 : index
    %52 = memref.load %arg1[%51, %c7] : memref<8x8xi32, #tpu.memory_space<smem>>
    %53 = vector.broadcast %52 : i32 to vector<8x128xi32>
    %54 = arith.select %50, %53, %48 : vector<8x128xi1>, vector<8x128xi32>
    %55 = arith.cmpi eq, %5, %54 : vector<8x128xi32>
    %cst = arith.constant 1.000000e+00 : f32
    %cst_5 = arith.constant 0.000000e+00 : f32
    %56 = vector.broadcast %cst : f32 to vector<8x128xf32>
    %57 = vector.broadcast %cst_5 : f32 to vector<8x128xf32>
    %58 = arith.select %55, %56, %57 : vector<8x128xi1>, vector<8x128xf32>
    %59 = arith.truncf %58 : vector<8x128xf32> to vector<8x128xbf16>
    %60 = arith.truncf %3 : vector<8x128xf32> to vector<8x128xbf16>
    %61 = tpu.concatenate %60, %59 in 1 : vector<8x128xbf16>, vector<8x128xbf16> -> vector<8x256xbf16>
    %c0_6 = arith.constant 0 : index
    %c0_7 = arith.constant 0 : index
    %62 = vector.load %arg2[%c0_6, %c0_7] : memref<256x512xbf16, #tpu.memory_space<vmem>>, vector<256x512xbf16>
    %cst_8 = arith.constant dense<0.000000e+00> : vector<8x512xf32>
    %63 = tpu.matmul %61, %62, %cst_8 {dimension_numbers = #tpu.dot_dimension_numbers<[1], [0], [0], [1], [0, 0, 1, 1], [], []>} : vector<8x256xbf16>, vector<256x512xbf16>, vector<8x512xf32> -> vector<8x512xf32>
    %c0_9 = arith.constant 0 : index
    %c0_10 = arith.constant 0 : index
    %64 = vector.load %arg3[%c0_9, %c0_10] : memref<1x512xf32, #tpu.memory_space<vmem>>, vector<1x512xf32>
    %65 = vector.broadcast %64 : vector<1x512xf32> to vector<8x512xf32>
    %66 = arith.addf %63, %65 : vector<8x512xf32>
    %67 = vector.extract_strided_slice %66 {offsets = [0, 0], sizes = [8, 128], strides = [1, 1]} : vector<8x512xf32> to vector<8x128xf32>
    %68 = arith.negf %67 : vector<8x128xf32>
    %69 = math.exp %68 : vector<8x128xf32>
    %cst_11 = arith.constant 1.000000e+00 : f32
    %70 = vector.broadcast %cst_11 : f32 to vector<8x128xf32>
    %71 = arith.addf %70, %69 : vector<8x128xf32>
    %72 = arith.divf %70, %71 : vector<8x128xf32>
    %73 = vector.extract_strided_slice %66 {offsets = [0, 128], sizes = [8, 128], strides = [1, 1]} : vector<8x512xf32> to vector<8x128xf32>
    %74 = arith.negf %73 : vector<8x128xf32>
    %75 = math.exp %74 : vector<8x128xf32>
    %cst_12 = arith.constant 1.000000e+00 : f32
    %76 = vector.broadcast %cst_12 : f32 to vector<8x128xf32>
    %77 = arith.addf %76, %75 : vector<8x128xf32>
    %78 = arith.divf %76, %77 : vector<8x128xf32>
    %79 = vector.extract_strided_slice %66 {offsets = [0, 256], sizes = [8, 128], strides = [1, 1]} : vector<8x512xf32> to vector<8x128xf32>
    %80 = vector.extract_strided_slice %66 {offsets = [0, 384], sizes = [8, 128], strides = [1, 1]} : vector<8x512xf32> to vector<8x128xf32>
    %81 = arith.mulf %72, %80 : vector<8x128xf32>
    %82 = arith.addf %79, %81 : vector<8x128xf32>
    %83 = math.tanh %82 : vector<8x128xf32>
    %cst_13 = arith.constant 1.000000e+00 : f32
    %84 = vector.broadcast %cst_13 : f32 to vector<8x128xf32>
    %85 = arith.subf %84, %78 : vector<8x128xf32>
    %86 = arith.mulf %85, %83 : vector<8x128xf32>
    %87 = arith.mulf %78, %3 : vector<8x128xf32>
    %88 = arith.addf %86, %87 : vector<8x128xf32>
    %c0_14 = arith.constant 0 : index
    %c0_15 = arith.constant 0 : index
    %89 = vector.load %arg8[%c0_14, %c0_15] : memref<8x128xf32, #tpu.memory_space<vmem>>, vector<8x128xf32>
    tpu.vector_store %arg8[%c0_14, %c0_15], %88 {strides = array<i32>} : memref<8x128xf32, #tpu.memory_space<vmem>>, vector<8x128xf32>,
    %90 = arith.truncf %88 : vector<8x128xf32> to vector<8x128xbf16>
    %c0_16 = arith.constant 0 : index
    %c0_17 = arith.constant 0 : index
    %91 = vector.load %arg4[%c0_16, %c0_17] : memref<128x128xbf16, #tpu.memory_space<vmem>>, vector<128x128xbf16>
    %cst_18 = arith.constant dense<0.000000e+00> : vector<8x128xf32>
    %92 = tpu.matmul %90, %91, %cst_18 {dimension_numbers = #tpu.dot_dimension_numbers<[1], [0], [0], [1], [0, 0, 1, 1], [], []>} : vector<8x128xbf16>, vector<128x128xbf16>, vector<8x128xf32> -> vector<8x128xf32>
    %c0_19 = arith.constant 0 : index
    %c0_20 = arith.constant 0 : index
    %93 = vector.load %arg5[%c0_19, %c0_20] : memref<1x128xf32, #tpu.memory_space<vmem>>, vector<1x128xf32>
    %94 = vector.broadcast %93 : vector<1x128xf32> to vector<8x128xf32>
    %95 = arith.addf %92, %94 : vector<8x128xf32>
    %cst_21 = arith.constant dense<0xFF800000> : vector<8xf32>
    %96 = vector.multi_reduction <maximumf>, %95, %cst_21 [1] : vector<8x128xf32> to vector<8xf32>
    %97 = vector.shape_cast %96 : vector<8xf32> to vector<8x1xf32>
    %98 = vector.broadcast %97 : vector<8x1xf32> to vector<8x128xf32>
    %99 = arith.subf %95, %98 : vector<8x128xf32>
    %100 = math.exp %99 : vector<8x128xf32>
    %cst_22 = arith.constant dense<0.000000e+00> : vector<8xf32>
    %101 = vector.multi_reduction <add>, %100, %cst_22 [1] : vector<8x128xf32> to vector<8xf32>
    %102 = vector.shape_cast %101 : vector<8xf32> to vector<8x1xf32>
    %103 = math.log %102 : vector<8x1xf32>
    %104 = vector.broadcast %103 : vector<8x1xf32> to vector<8x128xf32>
    %105 = arith.subf %99, %104 : vector<8x128xf32>
    %c0_23 = arith.constant 0 : index
    %c0_24 = arith.constant 0 : index
    %c0_25 = arith.constant 0 : index
    %106 = vector.load %arg7[%c0_23, %c0_24, %c0_25] : memref<1x8x128xf32, #tpu.memory_space<vmem>>, vector<1x8x128xf32>
    %107 = vector.shape_cast %106 : vector<1x8x128xf32> to vector<8x128xf32>
    %108 = vector.shape_cast %105 : vector<8x128xf32> to vector<1x8x128xf32>
    tpu.vector_store %arg7[%c0_23, %c0_24, %c0_25], %108 {strides = array<i32>} : memref<1x8x128xf32, #tpu.memory_space<vmem>>, vector<1x8x128xf32>,
    return
  }
  func.func @transform_0(%arg0: i32, %arg1: memref<8x8xi32, #tpu.memory_space<smem>>) -> (i32, i32) {
    %c0_i32 = arith.constant 0 : i32
    %c0_i32_0 = arith.constant 0 : i32
    %c0_i32_1 = arith.constant 0 : i32
    return %c0_i32, %c0_i32_0 : i32, i32
  }
  func.func @transform_1(%arg0: i32, %arg1: memref<8x8xi32, #tpu.memory_space<smem>>) -> (i32, i32) {
    %c0_i32 = arith.constant 0 : i32
    %c0_i32_0 = arith.constant 0 : i32
    %c0_i32_1 = arith.constant 0 : i32
    return %c0_i32, %c0_i32_0 : i32, i32
  }
  func.func @transform_2(%arg0: i32, %arg1: memref<8x8xi32, #tpu.memory_space<smem>>) -> (i32, i32) {
    %c0_i32 = arith.constant 0 : i32
    %c0_i32_0 = arith.constant 0 : i32
    %c0_i32_1 = arith.constant 0 : i32
    return %c0_i32, %c0_i32_0 : i32, i32
  }
  func.func @transform_3(%arg0: i32, %arg1: memref<8x8xi32, #tpu.memory_space<smem>>) -> (i32, i32) {
    %c0_i32 = arith.constant 0 : i32
    %c0_i32_0 = arith.constant 0 : i32
    %c0_i32_1 = arith.constant 0 : i32
    return %c0_i32, %c0_i32_0 : i32, i32
  }
  func.func @transform_4(%arg0: i32, %arg1: memref<8x8xi32, #tpu.memory_space<smem>>) -> (i32, i32) {
    %c0_i32 = arith.constant 0 : i32
    %c0_i32_0 = arith.constant 0 : i32
    %c0_i32_1 = arith.constant 0 : i32
    return %c0_i32, %c0_i32_0 : i32, i32
  }
  func.func @transform_5(%arg0: i32, %arg1: memref<8x8xi32, #tpu.memory_space<smem>>) -> (i32, i32, i32) {
    %c0_i32 = arith.constant 0 : i32
    %c0_i32_0 = arith.constant 0 : i32
    %c0_i32_1 = arith.constant 0 : i32
    return %arg0, %c0_i32, %c0_i32_0 : i32, i32, i32
  }
  func.func @transform_6(%arg0: i32, %arg1: memref<8x8xi32, #tpu.memory_space<smem>>) -> (i32, i32) {
    %c0_i32 = arith.constant 0 : i32
    %c0_i32_0 = arith.constant 0 : i32
    %c0_i32_1 = arith.constant 0 : i32
    return %c0_i32, %c0_i32_0 : i32, i32
  }
}

</mosaic_0001>

<llo_original>
// kernel: tpu_custom_call.1
$region0: #{tpu_custom_call.1}
  #allocation0 [shape = 'u32[]', space=smem, size = 0x4, offset = 0x4, fixed_abs, tag = 'smem constant byte address 0x4 - core index']
  #allocation1 [shape = 'u32[144,128]{1,0:T(1,128)}', space=vmem, size = 0x12000, scoped, tag = 'internal scratch']
  #allocation2 [shape = 's32[1]{0}', space=sflag, size = 0x4, scoped, tag = 'scoped memory for tpu_custom_call.1']
  #allocation3 [shape = 'u8[4096]{0}', space=smem, size = 0x1000, scoped, tag = 'prefetched SMEM operand 0']
  %s0 = inlined_call_operand.hbm [shape: s32[8,8], index: 0, kind: input, shape index: {}]
  %s1 = inlined_call_operand.hbm [shape: bf16[256,512], index: 1, kind: input, shape index: {}]
  %s2 = inlined_call_operand.vmem [shape: f32[1,512], index: 2, kind: input, shape index: {}]
  %s3 = inlined_call_operand.hbm [shape: bf16[128,128], index: 3, kind: input, shape index: {}]
  %s4 = inlined_call_operand.vmem [shape: f32[1,128], index: 4, kind: input, shape index: {}]
  %s5 = inlined_call_operand.vmem [shape: f32[8,128], index: 5, kind: input, shape index: {}]
  %s6 = inlined_call_operand.hbm [shape: f32[8,8,128], index: 6, kind: output, shape index: {0}]
  %s7 = inlined_call_operand.hbm [shape: f32[8,128], index: 7, kind: output, shape index: {1}]
  %8 = xla_tuple %s6, %s7
  %s9 = sld [smem:[#allocation0]]
  $region73: #{tpu_custom_call.1} parent=0
    _
  %s11 = ssub.s32 1, %s9
  %s12 = scalar_select 0, %s11, %s9
  %14 = dma.hbm_to_smem %s0, 128, [#allocation3], [#allocation2]
  %15 = dma.done [#allocation2], 128
  %16 = sfence
  $region1: #{tpu_custom_call.1} parent=0
    #allocation4 [shape = 'u8[262144]{0}', space=vmem, size = 0x40000, scoped, tag = 'input window, operand 1, single buffered']
    #allocation5 [shape = 's32[2]{0}', space=sflag, size = 0x8, scoped, tag = 'scoped memory for tpu_custom_call.1']
    #allocation6 [shape = 's32[2]{0}', space=sflag, size = 0x8, scoped, tag = 'scoped memory for tpu_custom_call.1']
    #allocation7 [shape = 'u8[32768]{0}', space=vmem, size = 0x8000, scoped, tag = 'input window, operand 3, single buffered']
    #allocation8 [shape = 's32[1]{0}', space=sflag, size = 0x4, scoped, tag = 'scoped memory for tpu_custom_call.1']
    #allocation9 [shape = 'u8[8192]{0}', space=vmem, size = 0x2000, scoped, tag = 'output window, operand 0']
    #allocation10 [shape = 'u8[4096]{0}', space=vmem, size = 0x1000, scoped, tag = 'output window, operand 1, single buffered']
    #allocation11 [shape = 's32[1]{0}', space=sflag, size = 0x4, scoped, tag = 'scoped memory for tpu_custom_call.1']
    %17 = vsyncpa [#allocation5], 0
    %18 = vsyncpa [#allocation8], 0
    %19 = vsyncpa [#allocation6], 0
    %s20 = scalar_lea.sflag [#allocation6], 1
    %21 = vsyncpa %s20, 0
    %22 = vsyncpa [#allocation11], 0
    loop: start=0, step=1, limit=10
    $region2: #{tpu_custom_call.1} parent=1 // loop_pre_header
      _
    $region3: #{tpu_custom_call.1} parent=1 // loop_header
      %s24 = sphi 0, %s28
      %p25 = scmp.ge.s32.totalorder %s24, 10
      %s32 = sphi 0, %s32
      %s34 = sphi 0, %s32
      %s35 = sphi 0, %s34
      %s49 = sphi 0, %s35
      %s53 = sphi 0, %s53
      %s55 = sphi 0, %s53
      %s56 = sphi 0, %s55
      %s70 = sphi 0, %s56
      %s74 = sphi 0, %s74
      %s76 = sphi 0, %s74
      %s77 = sphi 0, %s76
      %s91 = sphi 0, %s77
      %s95 = sphi 0, %s95
      %s97 = sphi 0, %s95
      %s98 = sphi 0, %s97
      %s112 = sphi 0, %s98
      %s116 = sphi 0, %s116
      %s118 = sphi 0, %s116
      %s119 = sphi 0, %s118
      %s133 = sphi 0, %s119
      %s139 = sphi 0, %s141
      %s142 = sphi 0, %s139
      %s143 = sphi 0, %s142
      %s159 = sphi 0, %s143
      %s163 = sphi 0, %s163
      %s165 = sphi 0, %s163
      %s166 = sphi 0, %s165
      %s180 = sphi 0, %s166
    $region4: #{tpu_custom_call.1} parent=1 // loop_header_branch
      %27 = sbr.rel (%p25) target = $region8
    $region5: #{tpu_custom_call.1} parent=1 // loop_body
      %s29 = ssub.s32 %s24, 1
      %s30 = ssub.s32 %s24, 2
      %s31 = sadd.s32 %s24, 1
      %s33 = sadd.s32 %s32, 1
      %p36 = scmp.eq.s32.totalorder %s24, 7
      %p37 = scmp.ne.s32.totalorder %s32, %s34
      %p38 = scmp.eq.s32.totalorder %s24, 0
      %p39 = por %p37, %p38
      %p40 = scmp.ne.s32.totalorder %s32, %s34
      %p41 = scmp.eq.s32.totalorder %s29, 7
      %p42 = por %p40, %p41
      %p43 = scmp.ne.s32.totalorder %s34, %s35
      %p44 = scmp.eq.s32.totalorder %s29, 0
      %p45 = por %p43, %p44
      %p46 = scmp.ne.s32.totalorder %s34, %s35
      %p47 = scmp.eq.s32.totalorder %s30, 7
      %p48 = por %p46, %p47
      %p50 = scmp.ne.s32.totalorder %s35, %s49
      %p51 = scmp.eq.s32.totalorder %s30, 0
      %p52 = por %p50, %p51
      %s54 = sadd.s32 %s53, 1
      %p57 = scmp.eq.s32.totalorder %s24, 7
      %p58 = scmp.ne.s32.totalorder %s53, %s55
      %p59 = scmp.eq.s32.totalorder %s24, 0
      %p60 = por %p58, %p59
      %p61 = scmp.ne.s32.totalorder %s53, %s55
      %p62 = scmp.eq.s32.totalorder %s29, 7
      %p63 = por %p61, %p62
      %p64 = scmp.ne.s32.totalorder %s55, %s56
      %p65 = scmp.eq.s32.totalorder %s29, 0
      %p66 = por %p64, %p65
      %p67 = scmp.ne.s32.totalorder %s55, %s56
      %p68 = scmp.eq.s32.totalorder %s30, 7
      %p69 = por %p67, %p68
      %p71 = scmp.ne.s32.totalorder %s56, %s70
      %p72 = scmp.eq.s32.totalorder %s30, 0
      %p73 = por %p71, %p72
      %s75 = sadd.s32 %s74, 1
      %p78 = scmp.eq.s32.totalorder %s24, 7
      %p79 = scmp.ne.s32.totalorder %s74, %s76
      %p80 = scmp.eq.s32.totalorder %s24, 0
      %p81 = por %p79, %p80
      %p82 = scmp.ne.s32.totalorder %s74, %s76
      %p83 = scmp.eq.s32.totalorder %s29, 7
      %p84 = por %p82, %p83
      %p85 = scmp.ne.s32.totalorder %s76, %s77
      %p86 = scmp.eq.s32.totalorder %s29, 0
      %p87 = por %p85, %p86
      %p88 = scmp.ne.s32.totalorder %s76, %s77
      %p89 = scmp.eq.s32.totalorder %s30, 7
      %p90 = por %p88, %p89
      %p92 = scmp.ne.s32.totalorder %s77, %s91
      %p93 = scmp.eq.s32.totalorder %s30, 0
      %p94 = por %p92, %p93
      %s96 = sadd.s32 %s95, 1
      %p99 = scmp.eq.s32.totalorder %s24, 7
      %p100 = scmp.ne.s32.totalorder %s95, %s97
      %p101 = scmp.eq.s32.totalorder %s24, 0
      %p102 = por %p100, %p101
      %p103 = scmp.ne.s32.totalorder %s95, %s97
      %p104 = scmp.eq.s32.totalorder %s29, 7
      %p105 = por %p103, %p104
      %p106 = scmp.ne.s32.totalorder %s97, %s98
      %p107 = scmp.eq.s32.totalorder %s29, 0
      %p108 = por %p106, %p107
      %p109 = scmp.ne.s32.totalorder %s97, %s98
      %p110 = scmp.eq.s32.totalorder %s30, 7
      %p111 = por %p109, %p110
      %p113 = scmp.ne.s32.totalorder %s98, %s112
      %p114 = scmp.eq.s32.totalorder %s30, 0
      %p115 = por %p113, %p114
      %s117 = sadd.s32 %s116, 1
      %p120 = scmp.eq.s32.totalorder %s24, 7
      %p121 = scmp.ne.s32.totalorder %s116, %s118
      %p122 = scmp.eq.s32.totalorder %s24, 0
      %p123 = por %p121, %p122
      %p124 = scmp.ne.s32.totalorder %s116, %s118
      %p125 = scmp.eq.s32.totalorder %s29, 7
      %p126 = por %p124, %p125
      %p127 = scmp.ne.s32.totalorder %s118, %s119
      %p128 = scmp.eq.s32.totalorder %s29, 0
      %p129 = por %p127, %p128
      %p130 = scmp.ne.s32.totalorder %s118, %s119
      %p131 = scmp.eq.s32.totalorder %s30, 7
      %p132 = por %p130, %p131
      %p134 = scmp.ne.s32.totalorder %s119, %s133
      %p135 = scmp.eq.s32.totalorder %s30, 0
      %p136 = por %p134, %p135
      %s137 = ssub.s32 %s24, %s31
      %p138 = scmp.eq.s32.totalorder %s137, 0
      %s140 = sadd.s32 %s139, 1
      %s141 = scalar_select %p138, %s139, %s140
      %p144 = pneg %p138
      %p145 = scmp.eq.s32.totalorder %s24, 7
      %p146 = por %p144, %p145
      %p147 = scmp.ne.s32.totalorder %s139, %s142
      %p148 = scmp.eq.s32.totalorder %s24, 0
      %p149 = por %p147, %p148
      %p150 = scmp.ne.s32.totalorder %s139, %s142
      %p151 = scmp.eq.s32.totalorder %s29, 7
      %p152 = por %p150, %p151
      %p153 = scmp.ne.s32.totalorder %s142, %s143
      %p154 = scmp.eq.s32.totalorder %s29, 0
      %p155 = por %p153, %p154
      %p156 = scmp.ne.s32.totalorder %s142, %s143
      %p157 = scmp.eq.s32.totalorder %s30, 7
      %p158 = por %p156, %p157
      %p160 = scmp.ne.s32.totalorder %s143, %s159
      %p161 = scmp.eq.s32.totalorder %s30, 0
      %p162 = por %p160, %p161
      %s164 = sadd.s32 %s163, 1
      %p167 = scmp.eq.s32.totalorder %s24, 7
      %p168 = scmp.ne.s32.totalorder %s163, %s165
      %p169 = scmp.eq.s32.totalorder %s24, 0
      %p170 = por %p168, %p169
      %p171 = scmp.ne.s32.totalorder %s163, %s165
      %p172 = scmp.eq.s32.totalorder %s29, 7
      %p173 = por %p171, %p172
      %p174 = scmp.ne.s32.totalorder %s165, %s166
      %p175 = scmp.eq.s32.totalorder %s29, 0
      %p176 = por %p174, %p175
      %p177 = scmp.ne.s32.totalorder %s165, %s166
      %p178 = scmp.eq.s32.totalorder %s30, 7
      %p179 = por %p177, %p178
      %p181 = scmp.ne.s32.totalorder %s166, %s180
      %p182 = scmp.eq.s32.totalorder %s30, 0
      %p183 = por %p181, %p182
      %p184 = scmp.le.s32.totalorder 1, %s24
      %p185 = scmp.lt.s32.totalorder %s24, 9
      %p186 = pnand %p184, %p185
      %p187 = pneg %p186
      // Predicated region
      $region9: #{tpu_custom_call.1} parent=5 // pred_check
        _
      $region10: #{tpu_custom_call.1} parent=5 // pred_check_branch
        %189 = sbr.rel (%p186) target = $region12
      $region11: #{tpu_custom_call.1} parent=5 // pred_region
        %s190 = ssub.s32 %s24, 1
        // Predicated region
        $region13: #{tpu_custom_call.1} parent=11 // pred_check
          %p191 = pneg %p45
        $region14: #{tpu_custom_call.1} parent=11 // pred_check_branch
          %193 = sbr.rel (%p191) target = $region16
        $region15: #{tpu_custom_call.1} parent=11 // pred_region
          %s195 = ssub.s32 8192, 8192
          %196 = vsyncadd [#allocation5], %s195
          %s197 = sshll.u32 [#allocation4], 4
          %s198 = int_to_ptr.vmem [resolvable:$true] %s197
          %203 = dma.hbm_to_vmem [thread:$0]  %s1, 8192, %s198, [#allocation5], 256, 256, 16
        $region16: #{tpu_custom_call.1} parent=11 // pred_fallthru
          _
        // Predicated region
        $region17: #{tpu_custom_call.1} parent=11 // pred_check
          %p204 = pneg %p66
        $region18: #{tpu_custom_call.1} parent=11 // pred_check_branch
          %206 = sbr.rel (%p204) target = $region20
        $region19: #{tpu_custom_call.1} parent=11 // pred_region
          _
        $region20: #{tpu_custom_call.1} parent=11 // pred_fallthru
          _
        // Predicated region
        $region21: #{tpu_custom_call.1} parent=11 // pred_check
          %p207 = pneg %p87
        $region22: #{tpu_custom_call.1} parent=11 // pred_check_branch
          %209 = sbr.rel (%p207) target = $region24
        $region23: #{tpu_custom_call.1} parent=11 // pred_region
          %s211 = ssub.s32 1024, 1024
          %212 = vsyncadd [#allocation8], %s211
          %s213 = sshll.u32 [#allocation7], 4
          %s214 = int_to_ptr.vmem [resolvable:$true] %s213
          %219 = dma.hbm_to_vmem [thread:$0]  %s3, 1024, %s214, [#allocation8], 64, 64, 4
        $region24: #{tpu_custom_call.1} parent=11 // pred_fallthru
          _
        // Predicated region
        $region25: #{tpu_custom_call.1} parent=11 // pred_check
          %p220 = pneg %p108
        $region26: #{tpu_custom_call.1} parent=11 // pred_check_branch
          %222 = sbr.rel (%p220) target = $region28
        $region27: #{tpu_custom_call.1} parent=11 // pred_region
          _
        $region28: #{tpu_custom_call.1} parent=11 // pred_fallthru
          _
        // Predicated region
        $region29: #{tpu_custom_call.1} parent=11 // pred_check
          %p223 = pneg %p129
        $region30: #{tpu_custom_call.1} parent=11 // pred_check_branch
          %225 = sbr.rel (%p223) target = $region32
        $region31: #{tpu_custom_call.1} parent=11 // pred_region
          _
        $region32: #{tpu_custom_call.1} parent=11 // pred_fallthru
          _
      $region12: #{tpu_custom_call.1} parent=5 // pred_fallthru
        _
      %p226 = scmp.lt.s32.totalorder %s24, 8
      // Predicated region
      $region33: #{tpu_custom_call.1} parent=5 // pred_check
        %p227 = pneg %p226
      $region34: #{tpu_custom_call.1} parent=5 // pred_check_branch
        %229 = sbr.rel (%p227) target = $region36
      $region35: #{tpu_custom_call.1} parent=5 // pred_region
        _
      $region36: #{tpu_custom_call.1} parent=5 // pred_fallthru
        _
      %p230 = scmp.le.s32.totalorder 1, %s24
      %p231 = scmp.lt.s32.totalorder %s24, 9
      %p232 = pnand %p230, %p231
      %p233 = pneg %p232
      // Predicated region
      $region37: #{tpu_custom_call.1} parent=5 // pred_check
        _
      $region38: #{tpu_custom_call.1} parent=5 // pred_check_branch
        %235 = sbr.rel (%p232) target = $region40
      $region39: #{tpu_custom_call.1} parent=5 // pred_region
        %s236 = ssub.s32 %s24, 1
        // Predicated region
        $region41: #{tpu_custom_call.1} parent=39 // pred_check
          %p237 = pneg %p45
        $region42: #{tpu_custom_call.1} parent=39 // pred_check_branch
          %239 = sbr.rel (%p237) target = $region44
        $region43: #{tpu_custom_call.1} parent=39 // pred_region
          %240 = dma.done [#allocation5], 8192
        $region44: #{tpu_custom_call.1} parent=39 // pred_fallthru
          _
        // Predicated region
        $region45: #{tpu_custom_call.1} parent=39 // pred_check
          %p241 = pneg %p87
        $region46: #{tpu_custom_call.1} parent=39 // pred_check_branch
          %243 = sbr.rel (%p241) target = $region48
        $region47: #{tpu_custom_call.1} parent=39 // pred_region
          %244 = dma.done [#allocation8], 1024
        $region48: #{tpu_custom_call.1} parent=39 // pred_fallthru
          _
        %p245 = pneg %p45
        %p246 = pneg %p42
        %p247 = pneg %p66
        %p248 = pneg %p63
        %p249 = pneg %p87
        %p250 = pneg %p84
        %p251 = pneg %p108
        %p252 = pneg %p105
        %p253 = pneg %p129
        %p254 = pneg %p126
        %p255 = pneg %p155
        %p256 = pneg %p152
        %s257 = sand.u32 %s142, 1
        %s258 = scalar_lea.sflag [#allocation6], %s257
        %s259 = sand.u32 %s142, 1
        %s260 = smul.addr %s259, 8
        %s261 = scalar_lea.vmem [#allocation9], %s260
        %p262 = pneg %p176
        %p263 = pneg %p173
        %p265 = scmp.eq.s32.totalorder %s29, 0
        // Predicated region
        $region49: #{tpu_custom_call.1} parent=39 // pred_check
          %p266 = pneg %p265
        $region50: #{tpu_custom_call.1} parent=39 // pred_check_branch
          %268 = sbr.rel (%p266) target = $region52
        $region51: #{tpu_custom_call.1} parent=39 // pred_region
          %v269 = vld [vmem:[%s5] sm:$0xff]
          %270 = vst [vmem:[#allocation10] sm:$0xff] %v269
        $region52: #{tpu_custom_call.1} parent=39 // pred_fallthru
          _
        %v271 = vld [vmem:[#allocation10] sm:$0xff]
        %v272 = vlaneseq
        %v273 = vshrl.u32 %v272, 7
        %v274 = vlaneseq
        %v275 = vand.u32 %v274, 127
        %vm276 = vcmp.eq.s32.totalorder %v273, 0
        %s277 = smul.u32 %s29, 128
        %s278 = sld [smem:[#allocation3 + %s277]]
        %v279 = vstv %s278
        %v280 = vsel %vm276, %v279, 0
        %vm281 = vcmp.eq.s32.totalorder %v273, 1
        %s282 = sadd.s32 %s277, 1
        %s283 = sld [smem:[#allocation3 + %s282]]
        %v284 = vstv %s283
        %v285 = vsel %vm281, %v284, %v280
        %vm286 = vcmp.eq.s32.totalorder %v273, 2
        %s287 = sadd.s32 %s277, 2
        %s288 = sld [smem:[#allocation3 + %s287]]
        %v289 = vstv %s288
        %v290 = vsel %vm286, %v289, %v285
        %vm291 = vcmp.eq.s32.totalorder %v273, 3
        %s292 = sadd.s32 %s277, 3
        %s293 = sld [smem:[#allocation3 + %s292]]
        %v294 = vstv %s293
        %v295 = vsel %vm291, %v294, %v290
        %vm296 = vcmp.eq.s32.totalorder %v273, 4
        %s297 = sadd.s32 %s277, 4
        %s298 = sld [smem:[#allocation3 + %s297]]
        %v299 = vstv %s298
        %v300 = vsel %vm296, %v299, %v295
        %vm301 = vcmp.eq.s32.totalorder %v273, 5
        %s302 = sadd.s32 %s277, 5
        %s303 = sld [smem:[#allocation3 + %s302]]
        %v304 = vstv %s303
        %v305 = vsel %vm301, %v304, %v300
        %vm306 = vcmp.eq.s32.totalorder %v273, 6
        %s307 = sadd.s32 %s277, 6
        %s308 = sld [smem:[#allocation3 + %s307]]
        %v309 = vstv %s308
        %v310 = vsel %vm306, %v309, %v305
        %vm311 = vcmp.eq.s32.totalorder %v273, 7
        %s312 = sadd.s32 %s277, 7
        %s313 = sld [smem:[#allocation3 + %s312]]
        %v314 = vstv %s313
        %v315 = vsel %vm311, %v314, %v310
        %vm316 = vcmp.eq.s32.totalorder %v275, %v315
        %v317 = vsel %vm316, 1.0, 0.0
        %v318 = vpack.c.bf16 %v317, %v317
        %v319 = vpack.c.bf16 %v271, %v271
        %v320 = vld [vmem:[#allocation4] sm:$0xff]
        %v321 = vld [vmem:[#allocation4 + $0x8] sm:$0xff]
        %v322 = vld [vmem:[#allocation4 + $0x10] sm:$0xff]
        %v323 = vld [vmem:[#allocation4 + $0x18] sm:$0xff]
        %v324 = vld [vmem:[#allocation4 + $0x20] sm:$0xff]
        %v325 = vld [vmem:[#allocation4 + $0x28] sm:$0xff]
        %v326 = vld [vmem:[#allocation4 + $0x30] sm:$0xff]
        %v327 = vld [vmem:[#allocation4 + $0x38] sm:$0xff]
        %v328 = vld [vmem:[#allocation4 + $0x40] sm:$0xff]
        %v329 = vld [vmem:[#allocation4 + $0x48] sm:$0xff]
        %v330 = vld [vmem:[#allocation4 + $0x50] sm:$0xff]
        %v331 = vld [vmem:[#allocation4 + $0x58] sm:$0xff]
        %v332 = vld [vmem:[#allocation4 + $0x60] sm:$0xff]
        %v333 = vld [vmem:[#allocation4 + $0x68] sm:$0xff]
        %v334 = vld [vmem:[#allocation4 + $0x70] sm:$0xff]
        %v335 = vld [vmem:[#allocation4 + $0x78] sm:$0xff]
        %v336 = vld [vmem:[#allocation4 + $0x80] sm:$0xff]
        %v337 = vld [vmem:[#allocation4 + $0x88] sm:$0xff]
        %v338 = vld [vmem:[#allocation4 + $0x90] sm:$0xff]
        %v339 = vld [vmem:[#allocation4 + $0x98] sm:$0xff]
        %v340 = vld [vmem:[#allocation4 + $0xa0] sm:$0xff]
        %v341 = vld [vmem:[#allocation4 + $0xa8] sm:$0xff]
        %v342 = vld [vmem:[#allocation4 + $0xb0] sm:$0xff]
        %v343 = vld [vmem:[#allocation4 + $0xb8] sm:$0xff]
        %v344 = vld [vmem:[#allocation4 + $0xc0] sm:$0xff]
        %v345 = vld [vmem:[#allocation4 + $0xc8] sm:$0xff]
        %v346 = vld [vmem:[#allocation4 + $0xd0] sm:$0xff]
        %v347 = vld [vmem:[#allocation4 + $0xd8] sm:$0xff]
        %v348 = vld [vmem:[#allocation4 + $0xe0] sm:$0xff]
        %v349 = vld [vmem:[#allocation4 + $0xe8] sm:$0xff]
        %v350 = vld [vmem:[#allocation4 + $0xf0] sm:$0xff]
        %v351 = vld [vmem:[#allocation4 + $0xf8] sm:$0xff]
        %v352 = vld [vmem:[#allocation4 + $0x100] sm:$0xff]
        %v353 = vld [vmem:[#allocation4 + $0x108] sm:$0xff]
        %v354 = vld [vmem:[#allocation4 + $0x110] sm:$0xff]
        %v355 = vld [vmem:[#allocation4 + $0x118] sm:$0xff]
        %v356 = vld [vmem:[#allocation4 + $0x120] sm:$0xff]
        %v357 = vld [vmem:[#allocation4 + $0x128] sm:$0xff]
        %v358 = vld [vmem:[#allocation4 + $0x130] sm:$0xff]
        %v359 = vld [vmem:[#allocation4 + $0x138] sm:$0xff]
        %v360 = vld [vmem:[#allocation4 + $0x140] sm:$0xff]
        %v361 = vld [vmem:[#allocation4 + $0x148] sm:$0xff]
        %v362 = vld [vmem:[#allocation4 + $0x150] sm:$0xff]
        %v363 = vld [vmem:[#allocation4 + $0x158] sm:$0xff]
        %v364 = vld [vmem:[#allocation4 + $0x160] sm:$0xff]
        %v365 = vld [vmem:[#allocation4 + $0x168] sm:$0xff]
        %v366 = vld [vmem:[#allocation4 + $0x170] sm:$0xff]
        %v367 = vld [vmem:[#allocation4 + $0x178] sm:$0xff]
        %v368 = vld [vmem:[#allocation4 + $0x180] sm:$0xff]
        %v369 = vld [vmem:[#allocation4 + $0x188] sm:$0xff]
        %v370 = vld [vmem:[#allocation4 + $0x190] sm:$0xff]
        %v371 = vld [vmem:[#allocation4 + $0x198] sm:$0xff]
        %v372 = vld [vmem:[#allocation4 + $0x1a0] sm:$0xff]
        %v373 = vld [vmem:[#allocation4 + $0x1a8] sm:$0xff]
        %v374 = vld [vmem:[#allocation4 + $0x1b0] sm:$0xff]
        %v375 = vld [vmem:[#allocation4 + $0x1b8] sm:$0xff]
        %v376 = vld [vmem:[#allocation4 + $0x1c0] sm:$0xff]
        %v377 = vld [vmem:[#allocation4 + $0x1c8] sm:$0xff]
        %v378 = vld [vmem:[#allocation4 + $0x1d0] sm:$0xff]
        %v379 = vld [vmem:[#allocation4 + $0x1d8] sm:$0xff]
        %v380 = vld [vmem:[#allocation4 + $0x1e0] sm:$0xff]
        %v381 = vld [vmem:[#allocation4 + $0x1e8] sm:$0xff]
        %v382 = vld [vmem:[#allocation4 + $0x1f0] sm:$0xff]
        %v383 = vld [vmem:[#allocation4 + $0x1f8] sm:$0xff]
        %v384 = vld [vmem:[%s2] sm:$0xf]
        %v386 = vlaneseq
        %v387 = vshrl.u32 %v386, 7
        %v388 = vsub.s32 0, %v387
        %v389 = vrot.slane %v384, %v388
        %v390 = vlaneseq
        %v391 = vshrl.u32 %v390, 7
        %v392 = vsub.s32 1, %v391
        %v393 = vrot.slane %v384, %v392
        %v394 = vlaneseq
        %v395 = vshrl.u32 %v394, 7
        %v396 = vsub.s32 2, %v395
        %v397 = vrot.slane %v384, %v396
        %v398 = vlaneseq
        %v399 = vshrl.u32 %v398, 7
        %v400 = vsub.s32 3, %v399
        %v401 = vrot.slane %v384, %v400
        %v470 = vunpack.c.l.b16 %v320
        %v471 = vunpack.c.h.b16 %v320
        %v472 = vunpack.c.l.b16 %v321
        %v473 = vunpack.c.h.b16 %v321
        %v474 = vunpack.c.l.b16 %v322
        %v475 = vunpack.c.h.b16 %v322
        %v476 = vunpack.c.l.b16 %v323
        %v477 = vunpack.c.h.b16 %v323
        %v478 = vunpack.c.l.b16 %v324
        %v479 = vunpack.c.h.b16 %v324
        %v480 = vunpack.c.l.b16 %v325
        %v481 = vunpack.c.h.b16 %v325
        %v482 = vunpack.c.l.b16 %v326
        %v483 = vunpack.c.h.b16 %v326
        %v484 = vunpack.c.l.b16 %v327
        %v485 = vunpack.c.h.b16 %v327
        %v486 = vunpack.c.l.b16 %v328
        %v487 = vunpack.c.h.b16 %v328
        %v488 = vunpack.c.l.b16 %v329
        %v489 = vunpack.c.h.b16 %v329
        %v490 = vunpack.c.l.b16 %v330
        %v491 = vunpack.c.h.b16 %v330
        %v492 = vunpack.c.l.b16 %v331
        %v493 = vunpack.c.h.b16 %v331
        %v494 = vunpack.c.l.b16 %v332
        %v495 = vunpack.c.h.b16 %v332
        %v496 = vunpack.c.l.b16 %v333
        %v497 = vunpack.c.h.b16 %v333
        %v498 = vunpack.c.l.b16 %v334
        %v499 = vunpack.c.h.b16 %v334
        %v500 = vunpack.c.l.b16 %v335
        %v501 = vunpack.c.h.b16 %v335
        %v502 = vunpack.c.l.b16 %v336
        %v503 = vunpack.c.h.b16 %v336
        %v504 = vunpack.c.l.b16 %v337
        %v505 = vunpack.c.h.b16 %v337
        %v506 = vunpack.c.l.b16 %v338
        %v507 = vunpack.c.h.b16 %v338
        %v508 = vunpack.c.l.b16 %v339
        %v509 = vunpack.c.h.b16 %v339
        %v510 = vunpack.c.l.b16 %v340
        %v511 = vunpack.c.h.b16 %v340
        %v512 = vunpack.c.l.b16 %v341
        %v513 = vunpack.c.h.b16 %v341
        %v514 = vunpack.c.l.b16 %v342
        %v515 = vunpack.c.h.b16 %v342
        %v516 = vunpack.c.l.b16 %v343
        %v517 = vunpack.c.h.b16 %v343
        %v518 = vunpack.c.l.b16 %v344
        %v519 = vunpack.c.h.b16 %v344
        %v520 = vunpack.c.l.b16 %v345
        %v521 = vunpack.c.h.b16 %v345
        %v522 = vunpack.c.l.b16 %v346
        %v523 = vunpack.c.h.b16 %v346
        %v524 = vunpack.c.l.b16 %v347
        %v525 = vunpack.c.h.b16 %v347
        %v526 = vunpack.c.l.b16 %v348
        %v527 = vunpack.c.h.b16 %v348
        %v528 = vunpack.c.l.b16 %v349
        %v529 = vunpack.c.h.b16 %v349
        %v530 = vunpack.c.l.b16 %v350
        %v531 = vunpack.c.h.b16 %v350
        %v532 = vunpack.c.l.b16 %v351
        %v533 = vunpack.c.h.b16 %v351
        %v534 = vunpack.c.l.b16 %v352
        %v535 = vunpack.c.h.b16 %v352
        %v536 = vunpack.c.l.b16 %v353
        %v537 = vunpack.c.h.b16 %v353
        %v538 = vunpack.c.l.b16 %v354
        %v539 = vunpack.c.h.b16 %v354
        %v540 = vunpack.c.l.b16 %v355
        %v541 = vunpack.c.h.b16 %v355
        %v542 = vunpack.c.l.b16 %v356
        %v543 = vunpack.c.h.b16 %v356
        %v544 = vunpack.c.l.b16 %v357
        %v545 = vunpack.c.h.b16 %v357
        %v546 = vunpack.c.l.b16 %v358
        %v547 = vunpack.c.h.b16 %v358
        %v548 = vunpack.c.l.b16 %v359
        %v549 = vunpack.c.h.b16 %v359
        %v550 = vunpack.c.l.b16 %v360
        %v551 = vunpack.c.h.b16 %v360
        %v552 = vunpack.c.l.b16 %v361
        %v553 = vunpack.c.h.b16 %v361
        %v554 = vunpack.c.l.b16 %v362
        %v555 = vunpack.c.h.b16 %v362
        %v556 = vunpack.c.l.b16 %v363
        %v557 = vunpack.c.h.b16 %v363
        %v558 = vunpack.c.l.b16 %v364
        %v559 = vunpack.c.h.b16 %v364
        %v560 = vunpack.c.l.b16 %v365
        %v561 = vunpack.c.h.b16 %v365
        %v562 = vunpack.c.l.b16 %v366
        %v563 = vunpack.c.h.b16 %v366
        %v564 = vunpack.c.l.b16 %v367
        %v565 = vunpack.c.h.b16 %v367
        %v566 = vunpack.c.l.b16 %v368
        %v567 = vunpack.c.h.b16 %v368
        %v568 = vunpack.c.l.b16 %v369
        %v569 = vunpack.c.h.b16 %v369
        %v570 = vunpack.c.l.b16 %v370
        %v571 = vunpack.c.h.b16 %v370
        %v572 = vunpack.c.l.b16 %v371
        %v573 = vunpack.c.h.b16 %v371
        %v574 = vunpack.c.l.b16 %v372
        %v575 = vunpack.c.h.b16 %v372
        %v576 = vunpack.c.l.b16 %v373
        %v577 = vunpack.c.h.b16 %v373
        %v578 = vunpack.c.l.b16 %v374
        %v579 = vunpack.c.h.b16 %v374
        %v580 = vunpack.c.l.b16 %v375
        %v581 = vunpack.c.h.b16 %v375
        %v582 = vunpack.c.l.b16 %v376
        %v583 = vunpack.c.h.b16 %v376
        %v584 = vunpack.c.l.b16 %v377
        %v585 = vunpack.c.h.b16 %v377
        %v586 = vunpack.c.l.b16 %v378
        %v587 = vunpack.c.h.b16 %v378
        %v588 = vunpack.c.l.b16 %v379
        %v589 = vunpack.c.h.b16 %v379
        %v590 = vunpack.c.l.b16 %v380
        %v591 = vunpack.c.h.b16 %v380
        %v592 = vunpack.c.l.b16 %v381
        %v593 = vunpack.c.h.b16 %v381
        %v594 = vunpack.c.l.b16 %v382
        %v595 = vunpack.c.h.b16 %v382
        %v596 = vunpack.c.l.b16 %v383
        %v597 = vunpack.c.h.b16 %v383
        %v598 = vpack.c.b16 %v474, %v470
        %v599 = vpack.c.b16 %v475, %v471
        %v600 = vpack.c.b16 %v476, %v472
        %v601 = vpack.c.b16 %v477, %v473
        %v602 = vpack.c.b16 %v482, %v478
        %v603 = vpack.c.b16 %v483, %v479
        %v604 = vpack.c.b16 %v484, %v480
        %v605 = vpack.c.b16 %v485, %v481
        %v606 = vpack.c.b16 %v490, %v486
        %v607 = vpack.c.b16 %v491, %v487
        %v608 = vpack.c.b16 %v492, %v488
        %v609 = vpack.c.b16 %v493, %v489
        %v610 = vpack.c.b16 %v498, %v494
        %v611 = vpack.c.b16 %v499, %v495
        %v612 = vpack.c.b16 %v500, %v496
        %v613 = vpack.c.b16 %v501, %v497
        %v614 = vpack.c.b16 %v506, %v502
        %v615 = vpack.c.b16 %v507, %v503
        %v616 = vpack.c.b16 %v508, %v504
        %v617 = vpack.c.b16 %v509, %v505
        %v618 = vpack.c.b16 %v514, %v510
        %v619 = vpack.c.b16 %v515, %v511
        %v620 = vpack.c.b16 %v516, %v512
        %v621 = vpack.c.b16 %v517, %v513
        %v622 = vpack.c.b16 %v522, %v518
        %v623 = vpack.c.b16 %v523, %v519
        %v624 = vpack.c.b16 %v524, %v520
        %v625 = vpack.c.b16 %v525, %v521
        %v626 = vpack.c.b16 %v530, %v526
        %v627 = vpack.c.b16 %v531, %v527
        %v628 = vpack.c.b16 %v532, %v528
        %v629 = vpack.c.b16 %v533, %v529
        %v630 = vpack.c.b16 %v538, %v534
        %v631 = vpack.c.b16 %v539, %v535
        %v632 = vpack.c.b16 %v540, %v536
        %v633 = vpack.c.b16 %v541, %v537
        %v634 = vpack.c.b16 %v546, %v542
        %v635 = vpack.c.b16 %v547, %v543
        %v636 = vpack.c.b16 %v548, %v544
        %v637 = vpack.c.b16 %v549, %v545
        %v638 = vpack.c.b16 %v554, %v550
        %v639 = vpack.c.b16 %v555, %v551
        %v640 = vpack.c.b16 %v556, %v552
        %v641 = vpack.c.b16 %v557, %v553
        %v642 = vpack.c.b16 %v562, %v558
        %v643 = vpack.c.b16 %v563, %v559
        %v644 = vpack.c.b16 %v564, %v560
        %v645 = vpack.c.b16 %v565, %v561
        %v646 = vpack.c.b16 %v570, %v566
        %v647 = vpack.c.b16 %v571, %v567
        %v648 = vpack.c.b16 %v572, %v568
        %v649 = vpack.c.b16 %v573, %v569
        %v650 = vpack.c.b16 %v578, %v574
        %v651 = vpack.c.b16 %v579, %v575
        %v652 = vpack.c.b16 %v580, %v576
        %v653 = vpack.c.b16 %v581, %v577
        %v654 = vpack.c.b16 %v586, %v582
        %v655 = vpack.c.b16 %v587, %v583
        %v656 = vpack.c.b16 %v588, %v584
        %v657 = vpack.c.b16 %v589, %v585
        %v658 = vpack.c.b16 %v594, %v590
        %v659 = vpack.c.b16 %v595, %v591
        %v660 = vpack.c.b16 %v596, %v592
        %v661 = vpack.c.b16 %v597, %v593
        %726 = vmatprep.subr.bf16.mxu0 %v599
        %727 = vmatpush1.bf16.msra.mxu0 %v598
        %728 = vmatprep.subr.bf16.mxu0 %v603
        %729 = vmatpush1.bf16.msra.mxu0 %v602
        %730 = vmatprep.subr.bf16.mxu0 %v607
        %731 = vmatpush1.bf16.msra.mxu0 %v606
        %732 = vmatprep.subr.bf16.mxu0 %v611
        %733 = vmatpush1.bf16.msra.mxu0 %v610
        %734 = vmatprep.subr.bf16.mxu0 %v615
        %735 = vmatpush1.bf16.msra.mxu0 %v614
        %736 = vmatprep.subr.bf16.mxu0 %v619
        %737 = vmatpush1.bf16.msra.mxu0 %v618
        %738 = vmatprep.subr.bf16.mxu0 %v623
        %739 = vmatpush1.bf16.msra.mxu0 %v622
        %740 = vmatprep.subr.bf16.mxu0 %v627
        %741 = vmatpush1.bf16.msra.mxu0 %v626
        %742 = vmatprep.subr.bf16.mxu0 %v631
        %743 = vmatpush1.bf16.msra.mxu0 %v630
        %744 = vmatprep.subr.bf16.mxu0 %v635
        %745 = vmatpush1.bf16.msra.mxu0 %v634
        %746 = vmatprep.subr.bf16.mxu0 %v639
        %747 = vmatpush1.bf16.msra.mxu0 %v638
        %748 = vmatprep.subr.bf16.mxu0 %v643
        %749 = vmatpush1.bf16.msra.mxu0 %v642
        %750 = vmatprep.subr.bf16.mxu0 %v647
        %751 = vmatpush1.bf16.msra.mxu0 %v646
        %752 = vmatprep.subr.bf16.mxu0 %v651
        %753 = vmatpush1.bf16.msra.mxu0 %v650
        %754 = vmatprep.subr.bf16.mxu0 %v655
        %755 = vmatpush1.bf16.msra.mxu0 %v654
        %756 = vmatprep.subr.bf16.mxu0 %v659
        %757 = vmatpush1.bf16.msra.mxu0 %v658
        %758 = vmatprep.mubr.bf16.mxu0 %v318
        %759 = vmatmul.mubr.bf16.gmra.mrb[0].mxu0 %v319
        %v760 = vpop.f32.mrb[0].mxu0
        %v761 = vadd.f32 %v389, %v760
        %v762 = vpop.f32.mrb[0].mxu0
        %v763 = vadd.f32 %v393, %v762
        %v764 = vpop.f32.mrb[0].mxu0
        %v765 = vpop.f32.mrb[0].mxu0
        %766 = vdwg.mxu0
        %767 = vmatprep.subr.bf16.mxu0 %v601
        %768 = vmatpush1.bf16.msra.mxu0 %v600
        %769 = vmatprep.subr.bf16.mxu0 %v605
        %770 = vmatpush1.bf16.msra.mxu0 %v604
        %771 = vmatprep.subr.bf16.mxu0 %v609
        %772 = vmatpush1.bf16.msra.mxu0 %v608
        %773 = vmatprep.subr.bf16.mxu0 %v613
        %774 = vmatpush1.bf16.msra.mxu0 %v612
        %775 = vmatprep.subr.bf16.mxu0 %v617
        %776 = vmatpush1.bf16.msra.mxu0 %v616
        %777 = vmatprep.subr.bf16.mxu0 %v621
        %778 = vmatpush1.bf16.msra.mxu0 %v620
        %779 = vmatprep.subr.bf16.mxu0 %v625
        %780 = vmatpush1.bf16.msra.mxu0 %v624
        %781 = vmatprep.subr.bf16.mxu0 %v629
        %782 = vmatpush1.bf16.msra.mxu0 %v628
        %783 = vmatprep.subr.bf16.mxu0 %v633
        %784 = vmatpush1.bf16.msra.mxu0 %v632
        %785 = vmatprep.subr.bf16.mxu0 %v637
        %786 = vmatpush1.bf16.msra.mxu0 %v636
        %787 = vmatprep.subr.bf16.mxu0 %v641
        %788 = vmatpush1.bf16.msra.mxu0 %v640
        %789 = vmatprep.subr.bf16.mxu0 %v645
        %790 = vmatpush1.bf16.msra.mxu0 %v644
        %791 = vmatprep.subr.bf16.mxu0 %v649
        %792 = vmatpush1.bf16.msra.mxu0 %v648
        %793 = vmatprep.subr.bf16.mxu0 %v653
        %794 = vmatpush1.bf16.msra.mxu0 %v652
        %795 = vmatprep.subr.bf16.mxu0 %v657
        %796 = vmatpush1.bf16.msra.mxu0 %v656
        %797 = vmatprep.subr.bf16.mxu0 %v661
        %798 = vmatpush1.bf16.msra.mxu0 %v660
        %799 = vmatprep.mubr.bf16.mxu0 %v318
        %800 = vmatmul.mubr.bf16.gmra.mrb[0].mxu0 %v319
        %v801 = vpop.f32.mrb[0].mxu0
        %v802 = vadd.f32 %v397, %v801
        %v803 = vpop.f32.mrb[0].mxu0
        %v804 = vadd.f32 %v401, %v803
        %v805 = vpop.f32.mrb[0].mxu0
        %v806 = vpop.f32.mrb[0].mxu0
        %807 = vdwg.mxu0
        %v808 = vxor.u32 %v761, 2147483648
        %v809 = vmul.f32 %v808, 1.442695
        %v810 = vpow.pop %v809
        %v811 = vadd.f32 %v810, 1.0
        %v812 = vrcp.pop %v811
        %v813 = vmul.f32 1.0, %v812
        %v814 = vxor.u32 %v763, 2147483648
        %v815 = vmul.f32 %v814, 1.442695
        %v816 = vpow.pop %v815
        %v817 = vadd.f32 %v816, 1.0
        %v818 = vrcp.pop %v817
        %v819 = vmul.f32 1.0, %v818
        %v820 = vmul.f32 %v813, %v804
        %v821 = vadd.f32 %v802, %v820
        %v822 = vtanh.pop %v821
        %v823 = vsub.f32 1.0, %v819
        %v824 = vmul.f32 %v823, %v822
        %v825 = vmul.f32 %v819, %v271
        %v826 = vadd.f32 %v824, %v825
        %827 = vst [vmem:[#allocation10] sm:$0xff] %v826
        %v828 = vpack.c.bf16 %v826, %v826
        %v829 = vld [vmem:[#allocation7] sm:$0xf]
        %v830 = vld [vmem:[#allocation7 + $0x4] sm:$0xf]
        %v831 = vld [vmem:[#allocation7 + $0x8] sm:$0xf]
        %v832 = vld [vmem:[#allocation7 + $0xc] sm:$0xf]
        %v833 = vld [vmem:[#allocation7 + $0x10] sm:$0xf]
        %v834 = vld [vmem:[#allocation7 + $0x14] sm:$0xf]
        %v835 = vld [vmem:[#allocation7 + $0x18] sm:$0xf]
        %v836 = vld [vmem:[#allocation7 + $0x1c] sm:$0xf]
        %v837 = vld [vmem:[#allocation7 + $0x20] sm:$0xf]
        %v838 = vld [vmem:[#allocation7 + $0x24] sm:$0xf]
        %v839 = vld [vmem:[#allocation7 + $0x28] sm:$0xf]
        %v840 = vld [vmem:[#allocation7 + $0x2c] sm:$0xf]
        %v841 = vld [vmem:[#allocation7 + $0x30] sm:$0xf]
        %v842 = vld [vmem:[#allocation7 + $0x34] sm:$0xf]
        %v843 = vld [vmem:[#allocation7 + $0x38] sm:$0xf]
        %v844 = vld [vmem:[#allocation7 + $0x3c] sm:$0xf]
        %v845 = vld [vmem:[%s4] sm:$0x1]
        %v847 = vlaneseq
        %v848 = vshrl.u32 %v847, 7
        %v849 = vsub.s32 0, %v848
        %v850 = vrot.slane %v845, %v849
        %v868 = vunpack.c.l.b16 %v829
        %v869 = vunpack.c.l.b16 %v830
        %v870 = vunpack.c.l.b16 %v831
        %v871 = vunpack.c.l.b16 %v832
        %v872 = vunpack.c.l.b16 %v833
        %v873 = vunpack.c.l.b16 %v834
        %v874 = vunpack.c.l.b16 %v835
        %v875 = vunpack.c.l.b16 %v836
        %v876 = vunpack.c.l.b16 %v837
        %v877 = vunpack.c.l.b16 %v838
        %v878 = vunpack.c.l.b16 %v839
        %v879 = vunpack.c.l.b16 %v840
        %v880 = vunpack.c.l.b16 %v841
        %v881 = vunpack.c.l.b16 %v842
        %v882 = vunpack.c.l.b16 %v843
        %v883 = vunpack.c.l.b16 %v844
        %v884 = vpack.c.b16 %v869, %v868
        %v885 = vpack.c.b16 %v871, %v870
        %v886 = vpack.c.b16 %v873, %v872
        %v887 = vpack.c.b16 %v875, %v874
        %v888 = vpack.c.b16 %v877, %v876
        %v889 = vpack.c.b16 %v879, %v878
        %v890 = vpack.c.b16 %v881, %v880
        %v891 = vpack.c.b16 %v883, %v882
        %900 = vmatprep.subr.bf16.mxu0 0
        %901 = vmatpush1.bf16.msra.mxu0 %v884
        %902 = vmatprep.subr.bf16.mxu0 0
        %903 = vmatpush1.bf16.msra.mxu0 %v885
        %904 = vmatprep.subr.bf16.mxu0 0
        %905 = vmatpush1.bf16.msra.mxu0 %v886
        %906 = vmatprep.subr.bf16.mxu0 0
        %907 = vmatpush1.bf16.msra.mxu0 %v887
        %908 = vmatprep.subr.bf16.mxu0 0
        %909 = vmatpush1.bf16.msra.mxu0 %v888
        %910 = vmatprep.subr.bf16.mxu0 0
        %911 = vmatpush1.bf16.msra.mxu0 %v889
        %912 = vmatprep.subr.bf16.mxu0 0
        %913 = vmatpush1.bf16.msra.mxu0 %v890
        %914 = vmatprep.subr.bf16.mxu0 0
        %915 = vmatpush1.bf16.msra.mxu0 %v891
        %916 = vmatprep.subr.bf16.mxu0 0
        %917 = vmatpush1.bf16.msra.mxu0 0
        %918 = vmatprep.subr.bf16.mxu0 0
        %919 = vmatpush1.bf16.msra.mxu0 0
        %920 = vmatprep.subr.bf16.mxu0 0
        %921 = vmatpush1.bf16.msra.mxu0 0
        %922 = vmatprep.subr.bf16.mxu0 0
        %923 = vmatpush1.bf16.msra.mxu0 0
        %924 = vmatprep.subr.bf16.mxu0 0
        %925 = vmatpush1.bf16.msra.mxu0 0
        %926 = vmatprep.subr.bf16.mxu0 0
        %927 = vmatpush1.bf16.msra.mxu0 0
        %928 = vmatprep.subr.bf16.mxu0 0
        %929 = vmatpush1.bf16.msra.mxu0 0
        %930 = vmatprep.subr.bf16.mxu0 0
        %931 = vmatpush1.bf16.msra.mxu0 0
        %932 = vmatprep.mubr.bf16.mxu0 0
        %933 = vmatmul.mubr.bf16.gmra.mrb[0].mxu0 %v828
        %v934 = vpop.f32.mrb[0].mxu0
        %v935 = vadd.f32 %v850, %v934
        %v936 = vpop.f32.mrb[0].mxu0
        %v937 = vpop.f32.mrb[0].mxu0
        %v938 = vpop.f32.mrb[0].mxu0
        %939 = vdwg.mxu0
        %940 = vmax.xlane.f32.xlu0 %v935
        %v941 = vpop.xlane.xlu0 %940
        %v942 = vsub.f32 %v935, %v941
        %v943 = vmul.f32 %v942, 1.442695
        %v944 = vpow.pop %v943
        %945 = vadd.xlane.f32.xlu0 %v944
        %v946 = vpop.xlane.xlu0 %945
        %v947 = vlog2.pop %v946
        %v948 = vmul.f32 %v947, 0.6931472
        %v949 = vsub.f32 %v942, %v948
        %950 = vst [vmem:[%s261] sm:$0xff] %v949
        %s951 = sand.u32 %s142, 1
        %s952 = scalar_lea.sflag [#allocation6], %s951
        %s953 = sand.u32 %s142, 1
        %s954 = smul.addr %s953, 8
        %s955 = scalar_lea.vmem [#allocation9], %s954
        // Predicated region
        $region53: #{tpu_custom_call.1} parent=39 // pred_check
          %p956 = pneg %p152
        $region54: #{tpu_custom_call.1} parent=39 // pred_check_branch
          %958 = sbr.rel (%p956) target = $region56
        $region55: #{tpu_custom_call.1} parent=39 // pred_region
          %s960 = ssub.s32 128, 128
          %961 = vsyncadd %s952, %s960
          %s962 = smul.addr %s29, 128
          %s963 = scalar_lea.hbm %s6, %s962
          %s965 = sshll.u32 %s955, 4
          %s966 = int_to_ptr.vmem [resolvable:$true] %s965
          %968 = dma.vmem_to_hbm [thread:$0]  %s966, 128, %s963, %s952
        $region56: #{tpu_custom_call.1} parent=39 // pred_fallthru
          _
        // Predicated region
        $region57: #{tpu_custom_call.1} parent=39 // pred_check
          %p969 = pneg %p173
        $region58: #{tpu_custom_call.1} parent=39 // pred_check_branch
          %971 = sbr.rel (%p969) target = $region60
        $region59: #{tpu_custom_call.1} parent=39 // pred_region
          %s973 = ssub.s32 128, 128
          %974 = vsyncadd [#allocation11], %s973
          %s976 = sshll.u32 [#allocation10], 4
          %s977 = int_to_ptr.vmem [resolvable:$true] %s976
          %979 = dma.vmem_to_hbm [thread:$0]  %s977, 128, %s7, [#allocation11]
        $region60: #{tpu_custom_call.1} parent=39 // pred_fallthru
          _
        // Predicated region
        $region61: #{tpu_custom_call.1} parent=39 // pred_check
          %p980 = pneg %p173
        $region62: #{tpu_custom_call.1} parent=39 // pred_check_branch
          %982 = sbr.rel (%p980) target = $region64
        $region63: #{tpu_custom_call.1} parent=39 // pred_region
          %983 = dma.done [#allocation11], 128
        $region64: #{tpu_custom_call.1} parent=39 // pred_fallthru
          _
      $region40: #{tpu_custom_call.1} parent=5 // pred_fallthru
        _
      %p984 = scmp.le.s32.totalorder 2, %s24
      // Predicated region
      $region65: #{tpu_custom_call.1} parent=5 // pred_check
        %p985 = pneg %p984
      $region66: #{tpu_custom_call.1} parent=5 // pred_check_branch
        %987 = sbr.rel (%p985) target = $region68
      $region67: #{tpu_custom_call.1} parent=5 // pred_region
        %s988 = ssub.s32 %s24, 2
        // Predicated region
        $region69: #{tpu_custom_call.1} parent=67 // pred_check
          %p989 = pneg %p158
        $region70: #{tpu_custom_call.1} parent=67 // pred_check_branch
          %991 = sbr.rel (%p989) target = $region72
        $region71: #{tpu_custom_call.1} parent=67 // pred_region
          %s992 = sand.u32 %s143, 1
          %s993 = scalar_lea.sflag [#allocation6], %s992
          %s994 = sand.u32 %s143, 1
          %s995 = smul.addr %s994, 8
          %s996 = scalar_lea.vmem [#allocation9], %s995
          %997 = dma.done %s993, 128
        $region72: #{tpu_custom_call.1} parent=67 // pred_fallthru
          _
      $region68: #{tpu_custom_call.1} parent=5 // pred_fallthru
        _
    $region6: #{tpu_custom_call.1} parent=1 // loop_footer
      %s28 = sadd.s32 1, %s24
    $region7: #{tpu_custom_call.1} parent=1 // loop_footer_branch
      %23 = sbr.rel target = $region3
    $region8: #{tpu_custom_call.1} parent=1 // loop_exit
      _
    %998 = vsyncpa [#allocation5], 1
    %s999 = scalar_lea.sflag [#allocation5], 1
    %1000 = vsyncpa %s999, 1
    %1001 = vsyncpa [#allocation8], 1
    %1002 = vsyncpa [#allocation6], 1
    %s1003 = scalar_lea.sflag [#allocation6], 1
    %1004 = vsyncpa %s1003, 1
    %1005 = vsyncpa [#allocation11], 1

</llo_original>
